<compile_context>
chip_gen: v7x
topology: tpu7x:2x2x1
jax: 0.10.0
libtpu: 0.0.40
codegen_flags: <defaults>
</compile_context>

<pallas_src>
import jax
import jax.numpy as jnp
from jax.experimental import pallas as pl
from jax.experimental.pallas import tpu as pltpu


def mlp_kernel(x_ref, w1_ref, b1_ref, w2_ref, b2_ref, out_ref):
    # fc1 on the MXU: contract x's feature (last) axis against w1's feature
    # axis -> (H, TB), putting the batch on the lane axis of the result.
    h = jax.lax.dot_general(
        w1_ref[...], x_ref[...],
        dimension_numbers=(((1,), (1,)), ((), ())),
        preferred_element_type=jnp.float32)
    # Bias broadcast-add + ReLU on the VPU (VALU has huge slack here).
    h = jnp.maximum(h + b1_ref[...], 0.0)                 # (H, TB)
    # fc2 (H -> 1): VPU multiply + cross-sublane reduce (XLU); avoids a second
    # MXU pass whose 10x1 RHS would pad out to a full column block.
    o = jnp.sum(h * w2_ref[...], axis=0, keepdims=True)    # (1, TB)
    o = o + b2_ref[0]                                       # scalar bias from SMEM
    # Sigmoid on the EUP; output stays lane-dense (batch on the lane axis).
    out_ref[...] = jax.nn.sigmoid(o).astype(out_ref.dtype)


def mlp_forward(x, w1, b1, w2, b2, *, tb=None):
    """Forward pass equivalent to the PyTorch module.

    x : (B, D_in) float32
    w1: (H, D_in), b1: (H,)    -- PyTorch nn.Linear layout (out_features, in_features)
    w2: (1, H),   b2: (1,)
    returns: (B, 1) float32
    """
    B, d_in = x.shape
    H = w1.shape[0]

    if tb is None:
        if B >= 512:
            # Two grid steps: still megacore-shardable on v7x, half the per-step
            # overhead of the old 4-step grid, and lane width a multiple of 256
            # to fill the v6e/v7x MXU.
            tb = pl.cdiv(pl.cdiv(B, 2), 256) * 256
        else:
            # Tiny batch: single step covering the whole (padded) batch.
            tb = max(B, 8)

    b_pad = pl.cdiv(B, tb) * tb
    if b_pad != B:
        # Padded rows evaluate to sigmoid(relu(b1) @ w2 + b2); they are sliced
        # off below, so this is purely layout padding.
        x = jnp.pad(x, ((0, b_pad - B), (0, 0)))

    b1_col = b1.reshape(H, 1).astype(jnp.float32)   # (H, 1) VMEM-resident block
    w2_col = w2.reshape(H, 1).astype(jnp.float32)   # (H, 1) VMEM-resident block
    b2_s = b2.reshape(1).astype(jnp.float32)        # scalar -> SMEM

    out = pl.pallas_call(
        mlp_kernel,
        out_shape=jax.ShapeDtypeStruct((1, b_pad), jnp.float32),
        grid=(b_pad // tb,),
        in_specs=[
            # Activations in natural (B, D) layout: tile only the batch axis.
            pl.BlockSpec((tb, d_in), lambda i: (i, 0)),
            # Tiny weights/bias: full-array blocks, VMEM-resident across steps.
            pl.BlockSpec((H, d_in), lambda i: (0, 0)),
            pl.BlockSpec((H, 1), lambda i: (0, 0)),
            pl.BlockSpec((H, 1), lambda i: (0, 0)),
            # Scalar fc2 bias in SMEM (no padded VMEM tile, no extra DMA).
            pl.BlockSpec(memory_space=pltpu.MemorySpace.SMEM),
        ],
        out_specs=pl.BlockSpec((1, tb), lambda i: (0, i)),
        compiler_params=pltpu.CompilerParams(
            # Batch tiles are independent -> shard across v7x's two TensorCores;
            # neutral on single-TC v5e/v6e.
            dimension_semantics=("parallel",),
        ),
    )(x, w1, b1_col, w2_col, b2_s)

    return out[0, :B].reshape(B, 1)


if __name__ == "__main__":
    # Ecoli (cp/im subset): 7 numeric features; hidden_size = 10, output = 1.
    input_size = 7
    hidden_size = 10
    output_size = 1
    batch = 512  # 2 lane-dense tiles of 256 (grid=2 -> v7x megacore)

    key = jax.random.PRNGKey(0)
    kx, kw1, kb1, kw2, kb2 = jax.random.split(key, 5)

    # Deterministic "standardized" input features.
    x = jax.random.normal(kx, (batch, input_size), dtype=jnp.float32)

    # PyTorch nn.Linear default init: U(-1/sqrt(fan_in), 1/sqrt(fan_in)),
    # weights kept in PyTorch (out_features, in_features) layout.
    lim1 = 1.0 / jnp.sqrt(float(input_size))
    lim2 = 1.0 / jnp.sqrt(float(hidden_size))
    w1 = jax.random.uniform(kw1, (hidden_size, input_size),
                            minval=-lim1, maxval=lim1, dtype=jnp.float32)
    b1 = jax.random.uniform(kb1, (hidden_size,),
                            minval=-lim1, maxval=lim1, dtype=jnp.float32)
    w2 = jax.random.uniform(kw2, (output_size, hidden_size),
                            minval=-lim2, maxval=lim2, dtype=jnp.float32)
    b2 = jax.random.uniform(kb2, (output_size,),
                            minval=-lim2, maxval=lim2, dtype=jnp.float32)

    out = mlp_forward(x, w1, b1, w2, b2)
    out = jax.block_until_ready(out)

    # Pure-JAX reference with PyTorch semantics: y = x @ W.T + b.
    ref = jax.nn.sigmoid(jnp.maximum(x @ w1.T + b1, 0.0) @ w2.T + b2)
    assert out.shape == (batch, output_size)
    assert jnp.allclose(out, ref, atol=1e-5, rtol=1e-5), (
        float(jnp.max(jnp.abs(out - ref))))

    print("KERNEL_OK")
</pallas_src>

<mosaic_0001>
module attributes {stable_mosaic.version = 11 : i64} {
  func.func @mlp_kernel(%arg0: i32, %arg1: memref<256x7xf32, #tpu.memory_space<vmem>>, %arg2: memref<10x7xf32, #tpu.memory_space<vmem>>, %arg3: memref<10x1xf32, #tpu.memory_space<vmem>>, %arg4: memref<10x1xf32, #tpu.memory_space<vmem>>, %arg5: memref<1xf32, #tpu.memory_space<smem>>, %arg6: memref<1x256xf32, #tpu.memory_space<vmem>>) attributes {dimension_semantics = [#tpu.dimension_semantics<parallel>], iteration_bounds = array<i64: 2>, scalar_prefetch = 0 : i64, scratch_operands = 0 : i64, tpu.core_type = #tpu.core_type<tc>, window_params = [{transform_indices = @transform_0, window_bounds = array<i64: 256, 7>}, {pipeline_mode = #tpu.pipeline_mode<synchronous>, transform_indices = @transform_1, window_bounds = array<i64: 10, 7>}, {pipeline_mode = #tpu.pipeline_mode<synchronous>, transform_indices = @transform_2, window_bounds = array<i64: 10, 1>}, {pipeline_mode = #tpu.pipeline_mode<synchronous>, transform_indices = @transform_3, window_bounds = array<i64: 10, 1>}, {transform_indices = @transform_4, window_bounds = array<i64: 1>}, {transform_indices = @transform_5, window_bounds = array<i64: 1, 256>}]} {
    %c0 = arith.constant 0 : index
    %c0_0 = arith.constant 0 : index
    %0 = vector.load %arg2[%c0, %c0_0] : memref<10x7xf32, #tpu.memory_space<vmem>>, vector<10x7xf32>
    %c0_1 = arith.constant 0 : index
    %c0_2 = arith.constant 0 : index
    %1 = vector.load %arg1[%c0_1, %c0_2] : memref<256x7xf32, #tpu.memory_space<vmem>>, vector<256x7xf32>
    %cst = arith.constant dense<0.000000e+00> : vector<10x256xf32>
    %2 = tpu.matmul %0, %1, %cst {dimension_numbers = #tpu.dot_dimension_numbers<[1], [1], [0], [0], [0, 0, 1, 0], [], []>} : vector<10x7xf32>, vector<256x7xf32>, vector<10x256xf32> -> vector<10x256xf32>
    %c0_3 = arith.constant 0 : index
    %c0_4 = arith.constant 0 : index
    %3 = vector.load %arg3[%c0_3, %c0_4] : memref<10x1xf32, #tpu.memory_space<vmem>>, vector<10x1xf32>
    %4 = vector.broadcast %3 : vector<10x1xf32> to vector<10x256xf32>
    %5 = arith.addf %2, %4 : vector<10x256xf32>
    %cst_5 = arith.constant 0.000000e+00 : f32
    %6 = vector.broadcast %cst_5 : f32 to vector<10x256xf32>
    %7 = arith.maximumf %5, %6 : vector<10x256xf32>
    %c0_6 = arith.constant 0 : index
    %c0_7 = arith.constant 0 : index
    %8 = vector.load %arg4[%c0_6, %c0_7] : memref<10x1xf32, #tpu.memory_space<vmem>>, vector<10x1xf32>
    %9 = vector.broadcast %8 : vector<10x1xf32> to vector<10x256xf32>
    %10 = arith.mulf %7, %9 : vector<10x256xf32>
    %cst_8 = arith.constant dense<0.000000e+00> : vector<256xf32>
    %11 = vector.multi_reduction <add>, %10, %cst_8 [0] : vector<10x256xf32> to vector<256xf32>
    %12 = vector.shape_cast %11 : vector<256xf32> to vector<1x256xf32>
    %c0_9 = arith.constant 0 : index
    %13 = memref.load %arg5[%c0_9] : memref<1xf32, #tpu.memory_space<smem>>
    %14 = vector.broadcast %13 : f32 to vector<1x256xf32>
    %15 = arith.addf %12, %14 : vector<1x256xf32>
    %16 = arith.negf %15 : vector<1x256xf32>
    %17 = math.exp %16 : vector<1x256xf32>
    %cst_10 = arith.constant 1.000000e+00 : f32
    %18 = vector.broadcast %cst_10 : f32 to vector<1x256xf32>
    %19 = arith.addf %18, %17 : vector<1x256xf32>
    %20 = arith.divf %18, %19 : vector<1x256xf32>
    %c0_11 = arith.constant 0 : index
    %c0_12 = arith.constant 0 : index
    %21 = vector.load %arg6[%c0_11, %c0_12] : memref<1x256xf32, #tpu.memory_space<vmem>>, vector<1x256xf32>
    tpu.vector_store %arg6[%c0_11, %c0_12], %20 {strides = array<i32>} : memref<1x256xf32, #tpu.memory_space<vmem>>, vector<1x256xf32>,
    return
  }
  func.func @transform_0(%arg0: i32) -> (i32, i32) {
    %c0_i32 = arith.constant 0 : i32
    %c0_i32_0 = arith.constant 0 : i32
    return %arg0, %c0_i32 : i32, i32
  }
  func.func @transform_1(%arg0: i32) -> (i32, i32) {
    %c0_i32 = arith.constant 0 : i32
    %c0_i32_0 = arith.constant 0 : i32
    %c0_i32_1 = arith.constant 0 : i32
    return %c0_i32, %c0_i32_0 : i32, i32
  }
  func.func @transform_2(%arg0: i32) -> (i32, i32) {
    %c0_i32 = arith.constant 0 : i32
    %c0_i32_0 = arith.constant 0 : i32
    %c0_i32_1 = arith.constant 0 : i32
    return %c0_i32, %c0_i32_0 : i32, i32
  }
  func.func @transform_3(%arg0: i32) -> (i32, i32) {
    %c0_i32 = arith.constant 0 : i32
    %c0_i32_0 = arith.constant 0 : i32
    %c0_i32_1 = arith.constant 0 : i32
    return %c0_i32, %c0_i32_0 : i32, i32
  }
  func.func @transform_4(%arg0: i32) -> i32 {
    %c0_i32 = arith.constant 0 : i32
    %c0_i32_0 = arith.constant 0 : i32
    return %c0_i32 : i32
  }
  func.func @transform_5(%arg0: i32) -> (i32, i32) {
    %c0_i32 = arith.constant 0 : i32
    %c0_i32_0 = arith.constant 0 : i32
    return %c0_i32, %arg0 : i32, i32
  }
}

</mosaic_0001>

<llo_original>
// kernel: tpu_custom_call.1
$region0: #{tpu_custom_call.1}
  #allocation0 [shape = 'u32[]', space=smem, size = 0x4, offset = 0x4, fixed_abs, tag = 'smem constant byte address 0x4 - core index']
  #allocation1 [shape = 'u32[144,128]{1,0:T(1,128)}', space=vmem, size = 0x12000, scoped, tag = 'internal scratch']
  #allocation2 [shape = 'f32[1]{0:T(128)S(6)}', space=smem, size = 0x200, scoped, tag = 'scoped memory for tpu_custom_call.1']
  %s0 = inlined_call_operand.vmem [shape: f32[512,7], index: 0, kind: input, shape index: {}]
  %s1 = inlined_call_operand.vmem [shape: f32[10,7], index: 1, kind: input, shape index: {}]
  %s2 = inlined_call_operand.vmem [shape: f32[10,1], index: 2, kind: input, shape index: {}]
  %s3 = inlined_call_operand.vmem [shape: f32[10,1], index: 3, kind: input, shape index: {}]
  %s4 = inlined_call_operand.<no memory space> [shape: f32[1], index: 4, kind: input, shape index: {}]
  %s5 = inlined_call_operand.hbm [shape: f32[1,512], index: 5, kind: output, shape index: {}]
  %s6 = sld [smem:[#allocation0]]
  $region53: #{tpu_custom_call.1} parent=0
    _
  %s8 = ssub.s32 1, %s6
  %s9 = scalar_select 0, %s8, %s6
  %10 = sst [smem:[#allocation2]] %s4
  $region1: #{tpu_custom_call.1} parent=0
    #allocation3 [shape = 'u8[2048]{0}', space=vmem, size = 0x800, scoped, tag = 'output window, operand 0']
    #allocation4 [shape = 's32[2]{0}', space=sflag, size = 0x8, scoped, tag = 'scoped memory for tpu_custom_call.1']
    %11 = vsyncpa [#allocation4], 0
    %s12 = scalar_lea.sflag [#allocation4], 1
    %13 = vsyncpa %s12, 0
    loop: start=0, step=1, limit=4
    $region2: #{tpu_custom_call.1} parent=1 // loop_pre_header
      _
    $region3: #{tpu_custom_call.1} parent=1 // loop_header
      %s15 = sphi 0, %s19
      %p16 = scmp.ge.s32.totalorder %s15, 4
      %s25 = sphi 0, %s27
      %s28 = sphi 0, %s25
      %s29 = sphi 0, %s28
      %s45 = sphi 0, %s29
      %s49 = sphi 0, %s49
      %s51 = sphi 0, %s49
      %s52 = sphi 0, %s51
      %s66 = sphi 0, %s52
      %s70 = sphi 0, %s70
      %s72 = sphi 0, %s70
      %s73 = sphi 0, %s72
      %s87 = sphi 0, %s73
      %s91 = sphi 0, %s91
      %s93 = sphi 0, %s91
      %s94 = sphi 0, %s93
      %s108 = sphi 0, %s94
      %s112 = sphi 0, %s112
      %s114 = sphi 0, %s112
      %s115 = sphi 0, %s114
      %s129 = sphi 0, %s115
      %s135 = sphi 0, %s137
      %s138 = sphi 0, %s135
      %s139 = sphi 0, %s138
      %s155 = sphi 0, %s139
    $region4: #{tpu_custom_call.1} parent=1 // loop_header_branch
      %18 = sbr.rel (%p16) target = $region8
    $region5: #{tpu_custom_call.1} parent=1 // loop_body
      %s20 = ssub.s32 %s15, 1
      %s21 = ssub.s32 %s15, 2
      %s22 = sadd.s32 %s15, 1
      %s23 = ssub.s32 %s15, %s22
      %p24 = scmp.eq.s32.totalorder %s23, 0
      %s26 = sadd.s32 %s25, 1
      %s27 = scalar_select %p24, %s25, %s26
      %p30 = pneg %p24
      %p31 = scmp.eq.s32.totalorder %s15, 1
      %p32 = por %p30, %p31
      %p33 = scmp.ne.s32.totalorder %s25, %s28
      %p34 = scmp.eq.s32.totalorder %s15, 0
      %p35 = por %p33, %p34
      %p36 = scmp.ne.s32.totalorder %s25, %s28
      %p37 = scmp.eq.s32.totalorder %s20, 1
      %p38 = por %p36, %p37
      %p39 = scmp.ne.s32.totalorder %s28, %s29
      %p40 = scmp.eq.s32.totalorder %s20, 0
      %p41 = por %p39, %p40
      %p42 = scmp.ne.s32.totalorder %s28, %s29
      %p43 = scmp.eq.s32.totalorder %s21, 1
      %p44 = por %p42, %p43
      %p46 = scmp.ne.s32.totalorder %s29, %s45
      %p47 = scmp.eq.s32.totalorder %s21, 0
      %p48 = por %p46, %p47
      %s50 = sadd.s32 %s49, 1
      %p53 = scmp.eq.s32.totalorder %s15, 1
      %p54 = scmp.ne.s32.totalorder %s49, %s51
      %p55 = scmp.eq.s32.totalorder %s15, 0
      %p56 = por %p54, %p55
      %p57 = scmp.ne.s32.totalorder %s49, %s51
      %p58 = scmp.eq.s32.totalorder %s20, 1
      %p59 = por %p57, %p58
      %p60 = scmp.ne.s32.totalorder %s51, %s52
      %p61 = scmp.eq.s32.totalorder %s20, 0
      %p62 = por %p60, %p61
      %p63 = scmp.ne.s32.totalorder %s51, %s52
      %p64 = scmp.eq.s32.totalorder %s21, 1
      %p65 = por %p63, %p64
      %p67 = scmp.ne.s32.totalorder %s52, %s66
      %p68 = scmp.eq.s32.totalorder %s21, 0
      %p69 = por %p67, %p68
      %s71 = sadd.s32 %s70, 1
      %p74 = scmp.eq.s32.totalorder %s15, 1
      %p75 = scmp.ne.s32.totalorder %s70, %s72
      %p76 = scmp.eq.s32.totalorder %s15, 0
      %p77 = por %p75, %p76
      %p78 = scmp.ne.s32.totalorder %s70, %s72
      %p79 = scmp.eq.s32.totalorder %s20, 1
      %p80 = por %p78, %p79
      %p81 = scmp.ne.s32.totalorder %s72, %s73
      %p82 = scmp.eq.s32.totalorder %s20, 0
      %p83 = por %p81, %p82
      %p84 = scmp.ne.s32.totalorder %s72, %s73
      %p85 = scmp.eq.s32.totalorder %s21, 1
      %p86 = por %p84, %p85
      %p88 = scmp.ne.s32.totalorder %s73, %s87
      %p89 = scmp.eq.s32.totalorder %s21, 0
      %p90 = por %p88, %p89
      %s92 = sadd.s32 %s91, 1
      %p95 = scmp.eq.s32.totalorder %s15, 1
      %p96 = scmp.ne.s32.totalorder %s91, %s93
      %p97 = scmp.eq.s32.totalorder %s15, 0
      %p98 = por %p96, %p97
      %p99 = scmp.ne.s32.totalorder %s91, %s93
      %p100 = scmp.eq.s32.totalorder %s20, 1
      %p101 = por %p99, %p100
      %p102 = scmp.ne.s32.totalorder %s93, %s94
      %p103 = scmp.eq.s32.totalorder %s20, 0
      %p104 = por %p102, %p103
      %p105 = scmp.ne.s32.totalorder %s93, %s94
      %p106 = scmp.eq.s32.totalorder %s21, 1
      %p107 = por %p105, %p106
      %p109 = scmp.ne.s32.totalorder %s94, %s108
      %p110 = scmp.eq.s32.totalorder %s21, 0
      %p111 = por %p109, %p110
      %s113 = sadd.s32 %s112, 1
      %p116 = scmp.eq.s32.totalorder %s15, 1
      %p117 = scmp.ne.s32.totalorder %s112, %s114
      %p118 = scmp.eq.s32.totalorder %s15, 0
      %p119 = por %p117, %p118
      %p120 = scmp.ne.s32.totalorder %s112, %s114
      %p121 = scmp.eq.s32.totalorder %s20, 1
      %p122 = por %p120, %p121
      %p123 = scmp.ne.s32.totalorder %s114, %s115
      %p124 = scmp.eq.s32.totalorder %s20, 0
      %p125 = por %p123, %p124
      %p126 = scmp.ne.s32.totalorder %s114, %s115
      %p127 = scmp.eq.s32.totalorder %s21, 1
      %p128 = por %p126, %p127
      %p130 = scmp.ne.s32.totalorder %s115, %s129
      %p131 = scmp.eq.s32.totalorder %s21, 0
      %p132 = por %p130, %p131
      %s133 = ssub.s32 %s15, %s22
      %p134 = scmp.eq.s32.totalorder %s133, 0
      %s136 = sadd.s32 %s135, 1
      %s137 = scalar_select %p134, %s135, %s136
      %p140 = pneg %p134
      %p141 = scmp.eq.s32.totalorder %s15, 1
      %p142 = por %p140, %p141
      %p143 = scmp.ne.s32.totalorder %s135, %s138
      %p144 = scmp.eq.s32.totalorder %s15, 0
      %p145 = por %p143, %p144
      %p146 = scmp.ne.s32.totalorder %s135, %s138
      %p147 = scmp.eq.s32.totalorder %s20, 1
      %p148 = por %p146, %p147
      %p149 = scmp.ne.s32.totalorder %s138, %s139
      %p150 = scmp.eq.s32.totalorder %s20, 0
      %p151 = por %p149, %p150
      %p152 = scmp.ne.s32.totalorder %s138, %s139
      %p153 = scmp.eq.s32.totalorder %s21, 1
      %p154 = por %p152, %p153
      %p156 = scmp.ne.s32.totalorder %s139, %s155
      %p157 = scmp.eq.s32.totalorder %s21, 0
      %p158 = por %p156, %p157
      %p159 = scmp.le.s32.totalorder 1, %s15
      %p160 = scmp.lt.s32.totalorder %s15, 3
      %p161 = pnand %p159, %p160
      %p162 = pneg %p161
      // Predicated region
      $region9: #{tpu_custom_call.1} parent=5 // pred_check
        _
      $region10: #{tpu_custom_call.1} parent=5 // pred_check_branch
        %164 = sbr.rel (%p161) target = $region12
      $region11: #{tpu_custom_call.1} parent=5 // pred_region
        %s165 = ssub.s32 %s15, 1
        // Predicated region
        $region13: #{tpu_custom_call.1} parent=11 // pred_check
          %p166 = pneg %p62
        $region14: #{tpu_custom_call.1} parent=11 // pred_check_branch
          %168 = sbr.rel (%p166) target = $region16
        $region15: #{tpu_custom_call.1} parent=11 // pred_region
          _
        $region16: #{tpu_custom_call.1} parent=11 // pred_fallthru
          _
        // Predicated region
        $region17: #{tpu_custom_call.1} parent=11 // pred_check
          %p169 = pneg %p83
        $region18: #{tpu_custom_call.1} parent=11 // pred_check_branch
          %171 = sbr.rel (%p169) target = $region20
        $region19: #{tpu_custom_call.1} parent=11 // pred_region
          _
        $region20: #{tpu_custom_call.1} parent=11 // pred_fallthru
          _
        // Predicated region
        $region21: #{tpu_custom_call.1} parent=11 // pred_check
          %p172 = pneg %p104
        $region22: #{tpu_custom_call.1} parent=11 // pred_check_branch
          %174 = sbr.rel (%p172) target = $region24
        $region23: #{tpu_custom_call.1} parent=11 // pred_region
          _
        $region24: #{tpu_custom_call.1} parent=11 // pred_fallthru
          _
        // Predicated region
        $region25: #{tpu_custom_call.1} parent=11 // pred_check
          %p175 = pneg %p125
        $region26: #{tpu_custom_call.1} parent=11 // pred_check_branch
          %177 = sbr.rel (%p175) target = $region28
        $region27: #{tpu_custom_call.1} parent=11 // pred_region
          _
        $region28: #{tpu_custom_call.1} parent=11 // pred_fallthru
          _
      $region12: #{tpu_custom_call.1} parent=5 // pred_fallthru
        _
      %p178 = scmp.lt.s32.totalorder %s15, 2
      // Predicated region
      $region29: #{tpu_custom_call.1} parent=5 // pred_check
        %p179 = pneg %p178
      $region30: #{tpu_custom_call.1} parent=5 // pred_check_branch
        %181 = sbr.rel (%p179) target = $region32
      $region31: #{tpu_custom_call.1} parent=5 // pred_region
        // Predicated region
        $region33: #{tpu_custom_call.1} parent=31 // pred_check
          %p182 = pneg %p35
        $region34: #{tpu_custom_call.1} parent=31 // pred_check_branch
          %184 = sbr.rel (%p182) target = $region36
        $region35: #{tpu_custom_call.1} parent=31 // pred_region
          %s185 = smul.u32 32, %s15
          %p186 = scmp.lt.s32.totalorder %s185, 63
          %s187 = scalar_select %p186, %s185, 63
          %s188 = smul.addr %s187, 8
          %s189 = scalar_lea.vmem %s0, %s188
          %s190 = smul.u32 32, %s15
        $region36: #{tpu_custom_call.1} parent=31 // pred_fallthru
          _
      $region32: #{tpu_custom_call.1} parent=5 // pred_fallthru
        _
      %p191 = scmp.le.s32.totalorder 1, %s15
      %p192 = scmp.lt.s32.totalorder %s15, 3
      %p193 = pnand %p191, %p192
      %p194 = pneg %p193
      // Predicated region
      $region37: #{tpu_custom_call.1} parent=5 // pred_check
        _
      $region38: #{tpu_custom_call.1} parent=5 // pred_check_branch
        %196 = sbr.rel (%p193) target = $region40
      $region39: #{tpu_custom_call.1} parent=5 // pred_region
        %s197 = ssub.s32 %s15, 1
        %s198 = smul.u32 32, %s20
        %p199 = scmp.lt.s32.totalorder %s198, 63
        %s200 = scalar_select %p199, %s198, 63
        %s201 = smul.addr %s200, 8
        %s202 = scalar_lea.vmem %s0, %s201
        %p203 = pneg %p41
        %p204 = pneg %p38
        %p205 = pneg %p62
        %p206 = pneg %p59
        %p207 = pneg %p83
        %p208 = pneg %p80
        %p209 = pneg %p104
        %p210 = pneg %p101
        %p211 = pneg %p125
        %p212 = pneg %p122
        %p213 = pneg %p151
        %p214 = pneg %p148
        %s215 = sand.u32 %s138, 1
        %s216 = scalar_lea.sflag [#allocation4], %s215
        %s217 = sand.u32 %s138, 1
        %s218 = smul.addr %s217, 2
        %s219 = scalar_lea.vmem [#allocation3], %s218
        %s220 = smul.u32 32, %s20
        %p221 = scmp.lt.s32.totalorder %s220, 63
        %s222 = scalar_select %p221, %s220, 63
        %s223 = smul.addr %s222, 8
        %s224 = scalar_lea.vmem %s0, %s223
        %s225 = smul.u32 32, %s20
        %s226 = smul.u32 2, %s20
        %v227 = vld [vmem:[%s1] sm:$0xff]
        %v228 = vld [vmem:[%s1 + $0x8] sm:$0x3]
        %v229 = vld [vmem:[%s224] sm:$0xff]
        %v230 = vld [vmem:[%s224 + $0x8] sm:$0xff]
        %v231 = vld [vmem:[%s224 + $0x10] sm:$0xff]
        %v232 = vld [vmem:[%s224 + $0x18] sm:$0xff]
        %v233 = vld [vmem:[%s224 + $0x20] sm:$0xff]
        %v234 = vld [vmem:[%s224 + $0x28] sm:$0xff]
        %v235 = vld [vmem:[%s224 + $0x30] sm:$0xff]
        %v236 = vld [vmem:[%s224 + $0x38] sm:$0xff]
        %v237 = vld [vmem:[%s224 + $0x40] sm:$0xff]
        %v238 = vld [vmem:[%s224 + $0x48] sm:$0xff]
        %v239 = vld [vmem:[%s224 + $0x50] sm:$0xff]
        %v240 = vld [vmem:[%s224 + $0x58] sm:$0xff]
        %v241 = vld [vmem:[%s224 + $0x60] sm:$0xff]
        %v242 = vld [vmem:[%s224 + $0x68] sm:$0xff]
        %v243 = vld [vmem:[%s224 + $0x70] sm:$0xff]
        %v244 = vld [vmem:[%s224 + $0x78] sm:$0xff]
        %v245 = vld [vmem:[%s224 + $0x80] sm:$0xff]
        %v246 = vld [vmem:[%s224 + $0x88] sm:$0xff]
        %v247 = vld [vmem:[%s224 + $0x90] sm:$0xff]
        %v248 = vld [vmem:[%s224 + $0x98] sm:$0xff]
        %v249 = vld [vmem:[%s224 + $0xa0] sm:$0xff]
        %v250 = vld [vmem:[%s224 + $0xa8] sm:$0xff]
        %v251 = vld [vmem:[%s224 + $0xb0] sm:$0xff]
        %v252 = vld [vmem:[%s224 + $0xb8] sm:$0xff]
        %v253 = vld [vmem:[%s224 + $0xc0] sm:$0xff]
        %v254 = vld [vmem:[%s224 + $0xc8] sm:$0xff]
        %v255 = vld [vmem:[%s224 + $0xd0] sm:$0xff]
        %v256 = vld [vmem:[%s224 + $0xd8] sm:$0xff]
        %v257 = vld [vmem:[%s224 + $0xe0] sm:$0xff]
        %v258 = vld [vmem:[%s224 + $0xe8] sm:$0xff]
        %v259 = vld [vmem:[%s224 + $0xf0] sm:$0xff]
        %v260 = vld [vmem:[%s224 + $0xf8] sm:$0xff]
        %v261 = vld [vmem:[%s2] sm:$0xff]
        %v262 = vld [vmem:[%s2 + $0x8] sm:$0x3]
        %264 = vset.pattern.permute.xlu0 0
        %265 = vperm.xlu0 %264, %v261
        %v266 = vpop.permute.xlu0 %265
        %269 = vset.pattern.permute.xlu0 0
        %270 = vperm.xlu0 %269, %v262
        %v271 = vpop.permute.xlu0 %270
        %vm273 = vcmask 56320
        %v275 = vsel %vm273, %v227, 0
        %v278 = vsel %vm273, %v228, 0
        %v281 = vsel %vm273, %v229, 0
        %v284 = vsel %vm273, %v230, 0
        %v287 = vsel %vm273, %v231, 0
        %v290 = vsel %vm273, %v232, 0
        %v293 = vsel %vm273, %v233, 0
        %v296 = vsel %vm273, %v234, 0
        %v299 = vsel %vm273, %v235, 0
        %v302 = vsel %vm273, %v236, 0
        %v305 = vsel %vm273, %v237, 0
        %v308 = vsel %vm273, %v238, 0
        %v311 = vsel %vm273, %v239, 0
        %v314 = vsel %vm273, %v240, 0
        %v317 = vsel %vm273, %v241, 0
        %v320 = vsel %vm273, %v242, 0
        %v323 = vsel %vm273, %v243, 0
        %v326 = vsel %vm273, %v244, 0
        %v329 = vsel %vm273, %v245, 0
        %v332 = vsel %vm273, %v246, 0
        %v335 = vsel %vm273, %v247, 0
        %v338 = vsel %vm273, %v248, 0
        %v341 = vsel %vm273, %v249, 0
        %v344 = vsel %vm273, %v250, 0
        %v347 = vsel %vm273, %v251, 0
        %v350 = vsel %vm273, %v252, 0
        %v353 = vsel %vm273, %v253, 0
        %v356 = vsel %vm273, %v254, 0
        %v359 = vsel %vm273, %v255, 0
        %v362 = vsel %vm273, %v256, 0
        %v365 = vsel %vm273, %v257, 0
        %v368 = vsel %vm273, %v258, 0
        %v371 = vsel %vm273, %v259, 0
        %v374 = vsel %vm273, %v260, 0
        %376 = vmatprep.subr.mxu0 0.0
        %377 = vmatpush1.xpose.msra.mxu0 %v281
        %378 = vmatprep.subr.mxu0 0.0
        %379 = vmatpush1.xpose.msra.mxu0 %v284
        %380 = vmatprep.subr.mxu0 0.0
        %381 = vmatpush1.xpose.msra.mxu0 %v287
        %382 = vmatprep.subr.mxu0 0.0
        %383 = vmatpush1.xpose.msra.mxu0 %v290
        %384 = vmatprep.subr.mxu0 0.0
        %385 = vmatpush1.xpose.msra.mxu0 %v293
        %386 = vmatprep.subr.mxu0 0.0
        %387 = vmatpush1.xpose.msra.mxu0 %v296
        %388 = vmatprep.subr.mxu0 0.0
        %389 = vmatpush1.xpose.msra.mxu0 %v299
        %390 = vmatprep.subr.mxu0 0.0
        %391 = vmatpush1.xpose.msra.mxu0 %v302
        %392 = vmatprep.subr.mxu0 0.0
        %393 = vmatpush1.xpose.msra.mxu0 %v305
        %394 = vmatprep.subr.mxu0 0.0
        %395 = vmatpush1.xpose.msra.mxu0 %v308
        %396 = vmatprep.subr.mxu0 0.0
        %397 = vmatpush1.xpose.msra.mxu0 %v311
        %398 = vmatprep.subr.mxu0 0.0
        %399 = vmatpush1.xpose.msra.mxu0 %v314
        %400 = vmatprep.subr.mxu0 0.0
        %401 = vmatpush1.xpose.msra.mxu0 %v317
        %402 = vmatprep.subr.mxu0 0.0
        %403 = vmatpush1.xpose.msra.mxu0 %v320
        %404 = vmatprep.subr.mxu0 0.0
        %405 = vmatpush1.xpose.msra.mxu0 %v323
        %406 = vmatprep.subr.mxu0 0.0
        %407 = vmatpush1.xpose.msra.mxu0 %v326
        %408 = vmatprep.subr.mxu0 0.0
        %409 = vmatpush1.xpose.msra.mxu0 %v329
        %410 = vmatprep.subr.mxu0 0.0
        %411 = vmatpush1.xpose.msra.mxu0 %v332
        %412 = vmatprep.subr.mxu0 0.0
        %413 = vmatpush1.xpose.msra.mxu0 %v335
        %414 = vmatprep.subr.mxu0 0.0
        %415 = vmatpush1.xpose.msra.mxu0 %v338
        %416 = vmatprep.subr.mxu0 0.0
        %417 = vmatpush1.xpose.msra.mxu0 %v341
        %418 = vmatprep.subr.mxu0 0.0
        %419 = vmatpush1.xpose.msra.mxu0 %v344
        %420 = vmatprep.subr.mxu0 0.0
        %421 = vmatpush1.xpose.msra.mxu0 %v347
        %422 = vmatprep.subr.mxu0 0.0
        %423 = vmatpush1.xpose.msra.mxu0 %v350
        %424 = vmatprep.subr.mxu0 0.0
        %425 = vmatpush1.xpose.msra.mxu0 %v353
        %426 = vmatprep.subr.mxu0 0.0
        %427 = vmatpush1.xpose.msra.mxu0 %v356
        %428 = vmatprep.subr.mxu0 0.0
        %429 = vmatpush1.xpose.msra.mxu0 %v359
        %430 = vmatprep.subr.mxu0 0.0
        %431 = vmatpush1.xpose.msra.mxu0 %v362
        %432 = vmatprep.subr.mxu0 0.0
        %433 = vmatpush1.xpose.msra.mxu0 %v365
        %434 = vmatprep.subr.mxu0 0.0
        %435 = vmatpush1.xpose.msra.mxu0 %v368
        %436 = vmatprep.subr.mxu0 0.0
        %437 = vmatpush1.xpose.msra.mxu0 %v371
        %438 = vmatprep.subr.mxu0 0.0
        %439 = vmatpush1.xpose.msra.mxu0 %v374
        %440 = vmatprep.mubr.f32.mxu0 0.0
        %441 = vmatmul.mubr.f32.gmra.mrb[0].mxu0 %v275
        %v442 = vpop.f32.mrb[0].mxu0
        %v443 = vadd.f32 %v266, %v442
        %v444 = vpop.f32.mrb[0].mxu0
        %v445 = vadd.f32 %v266, %v444
        %446 = vmatprep.mubr.f32.mxu0 0.0
        %447 = vmatmul.mubr.f32.gmra.mrb[0].mxu0 %v278
        %v448 = vpop.f32.mrb[0].mxu0
        %v449 = vadd.f32 %v271, %v448
        %v450 = vpop.f32.mrb[0].mxu0
        %v451 = vadd.f32 %v271, %v450
        %452 = vdwg.mxu0
        %v453 = vmax.f32 %v443, 0.0
        %v454 = vmax.f32 %v445, 0.0
        %v455 = vmax.f32 %v449, 0.0
        %v456 = vmax.f32 %v451, 0.0
        %v457 = vld [vmem:[%s3] sm:$0xff]
        %v458 = vld [vmem:[%s3 + $0x8] sm:$0x3]
        %460 = vset.pattern.permute.xlu0 0
        %461 = vperm.xlu0 %460, %v457
        %v462 = vpop.permute.xlu0 %461
        %465 = vset.pattern.permute.xlu0 0
        %466 = vperm.xlu0 %465, %v458
        %v467 = vpop.permute.xlu0 %466
        %v469 = vmul.f32 %v453, %v462
        %v470 = vmul.f32 %v454, %v462
        %v471 = vmul.f32 %v455, %v467
        %v472 = vmul.f32 %v456, %v467
        %vm473 = vcmask 1041408
        %v474 = vsel %vm473, %v471, 0.0
        %v475 = vadd.f32 %v469, %v474
        %v476 = vrot.slane %v475, 4
        %v477 = vadd.f32 %v475, %v476
        %v478 = vrot.slane %v477, 2
        %v479 = vadd.f32 %v477, %v478
        %v480 = vrot.slane %v479, 1
        %v481 = vadd.f32 %v479, %v480
        %v482 = vsel %vm473, %v472, 0.0
        %v483 = vadd.f32 %v470, %v482
        %v484 = vrot.slane %v483, 4
        %v485 = vadd.f32 %v483, %v484
        %v486 = vrot.slane %v485, 2
        %v487 = vadd.f32 %v485, %v486
        %v488 = vrot.slane %v487, 1
        %v489 = vadd.f32 %v487, %v488
        %s490 = sld [smem:[#allocation2]]
        %v491 = vstv %s490
        %v492 = vadd.f32 %v481, %v491
        %v493 = vadd.f32 %v489, %v491
        %v494 = vxor.u32 %v492, 2147483648
        %v495 = vxor.u32 %v493, 2147483648
        %v496 = vmul.f32 %v494, 1.442695
        %v497 = vpow.pop %v496
        %v498 = vmul.f32 %v495, 1.442695
        %v499 = vpow.pop %v498
        %v500 = vadd.f32 %v497, 1.0
        %v501 = vadd.f32 %v499, 1.0
        %v502 = vrcp.pop %v500
        %v503 = vmul.f32 1.0, %v502
        %v504 = vrcp.pop %v501
        %v505 = vmul.f32 1.0, %v504
        %v508 = vcombine.low %v503, %v505
        %v510 = vunpack.c.l.s4 1966171168
        %v511 = vunpack.c.0.s8 %v510
        %v512 = vlaneseq
        %v513 = vshrl.u32 %v512, 7
        %v514 = vsub.s32 %v511, %v513
        %v515 = vrot.slane %v508, %v514
        %v517 = vunpack.c.l.s4 1966171168
        %v518 = vunpack.c.0.s8 %v517
        %v519 = vlaneseq
        %v520 = vshrl.u32 %v519, 7
        %v521 = vsub.s32 %v518, %v520
        %v522 = vrot.slane %v515, %v521
        %v524 = vlaneseq
        %vm525 = vcmp.ge.s32.totalorder %v524, 0
        %vm526 = vcmp.lt.s32.totalorder %v524, 256
        %vm527 = vmand %vm525, %vm526
        %528 = vst.msk [vmem:[%s219] sm:$0x3] %vm527, %v522
        %s529 = sand.u32 %s138, 1
        %s530 = scalar_lea.sflag [#allocation4], %s529
        %s531 = sand.u32 %s138, 1
        %s532 = smul.addr %s531, 2
        %s533 = scalar_lea.vmem [#allocation3], %s532
        // Predicated region
        $region41: #{tpu_custom_call.1} parent=39 // pred_check
          %p534 = pneg %p148
        $region42: #{tpu_custom_call.1} parent=39 // pred_check_branch
          %536 = sbr.rel (%p534) target = $region44
        $region43: #{tpu_custom_call.1} parent=39 // pred_region
          %s537 = smul.u32 2, %s20
          %s539 = ssub.s32 32, 32
          %540 = vsyncadd %s530, %s539
          %s541 = smul.addr %s537, 16
          %s542 = scalar_lea.hbm %s5, %s541
          %s544 = sshll.u32 %s533, 4
          %s545 = int_to_ptr.vmem [resolvable:$true] %s544
          %547 = dma.vmem_to_hbm [thread:$0]  %s545, 32, %s542, %s530
        $region44: #{tpu_custom_call.1} parent=39 // pred_fallthru
          _
      $region40: #{tpu_custom_call.1} parent=5 // pred_fallthru
        _
      %p548 = scmp.le.s32.totalorder 2, %s15
      // Predicated region
      $region45: #{tpu_custom_call.1} parent=5 // pred_check
        %p549 = pneg %p548
      $region46: #{tpu_custom_call.1} parent=5 // pred_check_branch
        %551 = sbr.rel (%p549) target = $region48
      $region47: #{tpu_custom_call.1} parent=5 // pred_region
        %s552 = ssub.s32 %s15, 2
        // Predicated region
        $region49: #{tpu_custom_call.1} parent=47 // pred_check
          %p553 = pneg %p154
        $region50: #{tpu_custom_call.1} parent=47 // pred_check_branch
          %555 = sbr.rel (%p553) target = $region52
        $region51: #{tpu_custom_call.1} parent=47 // pred_region
          %s556 = sand.u32 %s139, 1
          %s557 = scalar_lea.sflag [#allocation4], %s556
          %s558 = sand.u32 %s139, 1
          %s559 = smul.addr %s558, 2
          %s560 = scalar_lea.vmem [#allocation3], %s559
          %561 = dma.done %s557, 32
        $region52: #{tpu_custom_call.1} parent=47 // pred_fallthru
          _
      $region48: #{tpu_custom_call.1} parent=5 // pred_fallthru
        _
    $region6: #{tpu_custom_call.1} parent=1 // loop_footer
      %s19 = sadd.s32 1, %s15
    $region7: #{tpu_custom_call.1} parent=1 // loop_footer_branch
      %14 = sbr.rel target = $region3
    $region8: #{tpu_custom_call.1} parent=1 // loop_exit
      _
    %562 = vsyncpa [#allocation4], 1
    %s563 = scalar_lea.sflag [#allocation4], 1
    %564 = vsyncpa %s563, 1

</llo_original>
